<compile_context>
chip_gen: v7x
topology: tpu7x:2x2x1
jax: 0.10.0
libtpu: 0.0.40
codegen_flags: <defaults>
</compile_context>

<pallas_src>
import jax
import jax.numpy as jnp
from jax.experimental import pallas as pl
from jax.experimental.pallas import tpu as pltpu

LANE = 128     # vreg lane width
SUBLANE = 8    # f32 sublane count
OUT_DIM = 2    # logical output width of the torch module (fc1=24, fc2=32, out=2)


def _round_up(n, m):
    return ((n + m - 1) // m) * m


def dqn_kernel(x_ref, w1_ref, b1_ref, w2_ref, b2_ref, w3_ref, b3_ref, o_ref):
    """Fused 3-layer MLP: relu(x@w1+b1) -> relu(.@w2+b2) -> .@w3+b3.

    x / weights are bf16, lane-padded to 128; biases are f32 (1, 128);
    matmuls accumulate in f32 on the MXU; bias add + ReLU run in f32 on the VPU.
    """
    x = x_ref[...]                                                        # (TB, Dp) bf16
    h1 = jnp.dot(x, w1_ref[...], preferred_element_type=jnp.float32) + b1_ref[...]
    h1 = jnp.maximum(h1, 0.0).astype(jnp.bfloat16)                        # (TB, 128)
    h2 = jnp.dot(h1, w2_ref[...], preferred_element_type=jnp.float32) + b2_ref[...]
    h2 = jnp.maximum(h2, 0.0).astype(jnp.bfloat16)                        # (TB, 128)
    o = jnp.dot(h2, w3_ref[...], preferred_element_type=jnp.float32) + b3_ref[...]
    o_ref[...] = o.astype(o_ref.dtype)                                    # (TB, 128)


def prepare_params(params, d_in):
    """One-time: zero-pad lane dims to 128 (and w1's contraction dim to a
    multiple of 128), cast weights to bf16, keep biases in f32."""
    w1, b1, w2, b2, w3, b3 = params
    dp = _round_up(d_in, LANE)

    def pad_to(a, shape):
        return jnp.pad(a, [(0, s - c) for c, s in zip(a.shape, shape)])

    w1p = pad_to(w1, (dp, LANE)).astype(jnp.bfloat16)
    w2p = pad_to(w2, (LANE, LANE)).astype(jnp.bfloat16)
    w3p = pad_to(w3, (LANE, LANE)).astype(jnp.bfloat16)
    b1p = pad_to(b1, (1, LANE)).astype(jnp.float32)
    b2p = pad_to(b2, (1, LANE)).astype(jnp.float32)
    b3p = pad_to(b3, (1, LANE)).astype(jnp.float32)
    return (w1p, b1p, w2p, b2p, w3p, b3p)


def dqn_forward(x_nchw, padded_params):
    """x_nchw: (B, 3, H, W) float32. padded_params: output of prepare_params."""
    w1p, b1p, w2p, b2p, w3p, b3p = padded_params
    B = x_nchw.shape[0]
    dp = w1p.shape[0]

    # torch flatten(start_dim=1) on NCHW == channel-major reshape
    xf = x_nchw.reshape(B, -1).astype(jnp.bfloat16)
    d = xf.shape[1]

    # Pad batch to >= 8 sublanes; for big batches tile at TB=128 rows.
    bp = _round_up(max(B, SUBLANE), SUBLANE)
    if bp <= LANE:
        tb = bp
    else:
        tb = LANE
        bp = _round_up(bp, tb)
    xp = jnp.pad(xf, ((0, bp - B), (0, dp - d)))      # (bp, dp) bf16, zero rows/cols

    out_shape = jax.ShapeDtypeStruct((bp, LANE), jnp.float32)
    num_tiles = bp // tb

    if num_tiles == 1:
        # Single tile: no grid (avoids size-1 grid overhead); whole arrays in VMEM.
        vmem = pl.BlockSpec(memory_space=pltpu.MemorySpace.VMEM)
        out = pl.pallas_call(
            dqn_kernel,
            out_shape=out_shape,
            in_specs=[vmem] * 7,
            out_specs=vmem,
        )(xp, w1p, b1p, w2p, b2p, w3p, b3p)
    else:
        # Batch-tiled grid: x/out tiles pipelined, weights pinned at block (0,0)
        # so they are only DMA'd once. "parallel" -> sharded over v7x's 2 TCs.
        def fixed(shape):
            return pl.BlockSpec(shape, lambda i: (0,) * len(shape))

        out = pl.pallas_call(
            dqn_kernel,
            out_shape=out_shape,
            grid=(num_tiles,),
            in_specs=[
                pl.BlockSpec((tb, dp), lambda i: (i, 0)),
                fixed((dp, LANE)), fixed((1, LANE)),
                fixed((LANE, LANE)), fixed((1, LANE)),
                fixed((LANE, LANE)), fixed((1, LANE)),
            ],
            out_specs=pl.BlockSpec((tb, LANE), lambda i: (i, 0)),
            compiler_params=pltpu.CompilerParams(
                dimension_semantics=("parallel",)),
        )(xp, w1p, b1p, w2p, b2p, w3p, b3p)

    return out[:B, :OUT_DIM]


def init_params(key, img_height, img_width):
    """Deterministic synthetic parameters matching the torch module's shapes.
    Stored as (in, out) == torch weight (out, in) transposed."""
    d_in = img_height * img_width * 3
    dims = [(d_in, 24), (24, 32), (32, 2)]
    params = []
    for fan_in, fan_out in dims:
        kw, kb, key = jax.random.split(key, 3)
        bound = 1.0 / jnp.sqrt(fan_in)
        w = jax.random.uniform(kw, (fan_in, fan_out), jnp.float32, -bound, bound)
        b = jax.random.uniform(kb, (1, fan_out), jnp.float32, -bound, bound)
        params += [w, b]
    return tuple(params)


def dqn_reference_f32(x_nchw, params):
    """Exact torch-semantics reference in f32."""
    w1, b1, w2, b2, w3, b3 = params
    xf = x_nchw.reshape(x_nchw.shape[0], -1)
    h1 = jnp.maximum(xf @ w1 + b1, 0.0)
    h2 = jnp.maximum(h1 @ w2 + b2, 0.0)
    return h2 @ w3 + b3


def dqn_reference_mixed(x_nchw, params):
    """Numerics-matched reference: same bf16 inputs / f32 accumulation as the kernel."""
    w1, b1, w2, b2, w3, b3 = params
    xf = x_nchw.reshape(x_nchw.shape[0], -1).astype(jnp.bfloat16)
    h1 = jnp.dot(xf, w1.astype(jnp.bfloat16), preferred_element_type=jnp.float32) + b1
    h1 = jnp.maximum(h1, 0.0).astype(jnp.bfloat16)
    h2 = jnp.dot(h1, w2.astype(jnp.bfloat16), preferred_element_type=jnp.float32) + b2
    h2 = jnp.maximum(h2, 0.0).astype(jnp.bfloat16)
    return jnp.dot(h2, w3.astype(jnp.bfloat16), preferred_element_type=jnp.float32) + b3


if __name__ == "__main__":
    key = jax.random.PRNGKey(0)
    k_x, k_x2, k_p = jax.random.split(key, 3)

    C, H, W = 3, 16, 16                       # DQN(img_height=16, img_width=16)
    params = init_params(k_p, H, W)
    padded = prepare_params(params, C * H * W)
    fwd = jax.jit(dqn_forward)

    # Small-shape run (exercises the no-grid / single-tile path).
    B = 2
    x = jax.random.normal(k_x, (B, C, H, W), jnp.float32)
    out = jax.block_until_ready(fwd(x, padded))
    assert out.shape == (B, OUT_DIM)
    assert jnp.allclose(out, dqn_reference_mixed(x, params), atol=1e-2, rtol=1e-2), \
        "mismatch vs bf16-matched reference"
    assert jnp.allclose(out, dqn_reference_f32(x, params), atol=5e-2, rtol=5e-2), \
        "mismatch vs f32 reference (beyond bf16 tolerance)"

    # Larger replay-style batch (exercises the batch-tiled 'parallel' grid path).
    B2 = 130
    x2 = jax.random.normal(k_x2, (B2, C, H, W), jnp.float32)
    out2 = jax.block_until_ready(fwd(x2, padded))
    assert out2.shape == (B2, OUT_DIM)
    assert jnp.allclose(out2, dqn_reference_mixed(x2, params), atol=1e-2, rtol=1e-2), \
        "mismatch vs bf16-matched reference (batched)"
    assert jnp.allclose(out2, dqn_reference_f32(x2, params), atol=5e-2, rtol=5e-2), \
        "mismatch vs f32 reference (batched)"

    print("KERNEL_OK")
</pallas_src>

<mosaic_0001>
module attributes {stable_mosaic.version = 11 : i64} {
  func.func @dqn_kernel(%arg0: memref<8x768xbf16, #tpu.memory_space<vmem>>, %arg1: memref<768x128xbf16, #tpu.memory_space<vmem>>, %arg2: memref<1x128xf32, #tpu.memory_space<vmem>>, %arg3: memref<128x128xbf16, #tpu.memory_space<vmem>>, %arg4: memref<1x128xf32, #tpu.memory_space<vmem>>, %arg5: memref<128x128xbf16, #tpu.memory_space<vmem>>, %arg6: memref<1x128xf32, #tpu.memory_space<vmem>>, %arg7: memref<8x128xf32, #tpu.memory_space<vmem>>) attributes {dimension_semantics = [], scalar_prefetch = 0 : i64, scratch_operands = 0 : i64, tpu.core_type = #tpu.core_type<tc>} {
    %c0 = arith.constant 0 : index
    %c0_0 = arith.constant 0 : index
    %0 = vector.load %arg0[%c0, %c0_0] : memref<8x768xbf16, #tpu.memory_space<vmem>>, vector<8x768xbf16>
    %c0_1 = arith.constant 0 : index
    %c0_2 = arith.constant 0 : index
    %1 = vector.load %arg1[%c0_1, %c0_2] : memref<768x128xbf16, #tpu.memory_space<vmem>>, vector<768x128xbf16>
    %cst = arith.constant dense<0.000000e+00> : vector<8x128xf32>
    %2 = tpu.matmul %0, %1, %cst {dimension_numbers = #tpu.dot_dimension_numbers<[1], [0], [0], [1], [0, 0, 1, 1], [], []>} : vector<8x768xbf16>, vector<768x128xbf16>, vector<8x128xf32> -> vector<8x128xf32>
    %c0_3 = arith.constant 0 : index
    %c0_4 = arith.constant 0 : index
    %3 = vector.load %arg2[%c0_3, %c0_4] : memref<1x128xf32, #tpu.memory_space<vmem>>, vector<1x128xf32>
    %4 = vector.broadcast %3 : vector<1x128xf32> to vector<8x128xf32>
    %5 = arith.addf %2, %4 : vector<8x128xf32>
    %cst_5 = arith.constant 0.000000e+00 : f32
    %6 = vector.broadcast %cst_5 : f32 to vector<8x128xf32>
    %7 = arith.maximumf %5, %6 : vector<8x128xf32>
    %8 = arith.truncf %7 : vector<8x128xf32> to vector<8x128xbf16>
    %c0_6 = arith.constant 0 : index
    %c0_7 = arith.constant 0 : index
    %9 = vector.load %arg3[%c0_6, %c0_7] : memref<128x128xbf16, #tpu.memory_space<vmem>>, vector<128x128xbf16>
    %cst_8 = arith.constant dense<0.000000e+00> : vector<8x128xf32>
    %10 = tpu.matmul %8, %9, %cst_8 {dimension_numbers = #tpu.dot_dimension_numbers<[1], [0], [0], [1], [0, 0, 1, 1], [], []>} : vector<8x128xbf16>, vector<128x128xbf16>, vector<8x128xf32> -> vector<8x128xf32>
    %c0_9 = arith.constant 0 : index
    %c0_10 = arith.constant 0 : index
    %11 = vector.load %arg4[%c0_9, %c0_10] : memref<1x128xf32, #tpu.memory_space<vmem>>, vector<1x128xf32>
    %12 = vector.broadcast %11 : vector<1x128xf32> to vector<8x128xf32>
    %13 = arith.addf %10, %12 : vector<8x128xf32>
    %cst_11 = arith.constant 0.000000e+00 : f32
    %14 = vector.broadcast %cst_11 : f32 to vector<8x128xf32>
    %15 = arith.maximumf %13, %14 : vector<8x128xf32>
    %16 = arith.truncf %15 : vector<8x128xf32> to vector<8x128xbf16>
    %c0_12 = arith.constant 0 : index
    %c0_13 = arith.constant 0 : index
    %17 = vector.load %arg5[%c0_12, %c0_13] : memref<128x128xbf16, #tpu.memory_space<vmem>>, vector<128x128xbf16>
    %cst_14 = arith.constant dense<0.000000e+00> : vector<8x128xf32>
    %18 = tpu.matmul %16, %17, %cst_14 {dimension_numbers = #tpu.dot_dimension_numbers<[1], [0], [0], [1], [0, 0, 1, 1], [], []>} : vector<8x128xbf16>, vector<128x128xbf16>, vector<8x128xf32> -> vector<8x128xf32>
    %c0_15 = arith.constant 0 : index
    %c0_16 = arith.constant 0 : index
    %19 = vector.load %arg6[%c0_15, %c0_16] : memref<1x128xf32, #tpu.memory_space<vmem>>, vector<1x128xf32>
    %20 = vector.broadcast %19 : vector<1x128xf32> to vector<8x128xf32>
    %21 = arith.addf %18, %20 : vector<8x128xf32>
    %c0_17 = arith.constant 0 : index
    %c0_18 = arith.constant 0 : index
    %22 = vector.load %arg7[%c0_17, %c0_18] : memref<8x128xf32, #tpu.memory_space<vmem>>, vector<8x128xf32>
    tpu.vector_store %arg7[%c0_17, %c0_18], %21 {strides = array<i32>} : memref<8x128xf32, #tpu.memory_space<vmem>>, vector<8x128xf32>,
    return
  }
}

</mosaic_0001>

<llo_original>
// kernel: dqn_forward.1
$region0: #{dqn_forward.1}
  #allocation0 [shape = 'u32[]', space=smem, size = 0x4, offset = 0x4, fixed_abs, tag = 'smem constant byte address 0x4 - core index']
  #allocation1 [shape = 'u32[144,128]{1,0:T(1,128)}', space=vmem, size = 0x12000, scoped, tag = 'internal scratch']
  %s0 = inlined_call_operand.vmem [shape: bf16[8,768], index: 0, kind: input, shape index: {}]
  %s1 = inlined_call_operand.hbm [shape: bf16[768,128], index: 1, kind: input, shape index: {}]
  %s2 = inlined_call_operand.vmem [shape: f32[1,128], index: 2, kind: input, shape index: {}]
  %s3 = inlined_call_operand.vmem [shape: bf16[128,128], index: 3, kind: input, shape index: {}]
  %s4 = inlined_call_operand.vmem [shape: f32[1,128], index: 4, kind: input, shape index: {}]
  %s5 = inlined_call_operand.vmem [shape: bf16[128,128], index: 5, kind: input, shape index: {}]
  %s6 = inlined_call_operand.vmem [shape: f32[1,128], index: 6, kind: input, shape index: {}]
  %s7 = inlined_call_operand.vmem [shape: f32[8,128], index: 7, kind: output, shape index: {}]
  %s8 = sld [smem:[#allocation0]]
  $region42: #{dqn_forward.1} parent=0
    _
  %s10 = ssub.s32 1, %s8
  %s11 = scalar_select 0, %s10, %s8
  $region1: #{dqn_forward.1} parent=0
    #allocation2 [shape = 'u8[196608]{0}', space=vmem, size = 0x30000, scoped, tag = 'input window, operand 1, single buffered']
    #allocation3 [shape = 's32[1]{0}', space=sflag, size = 0x4, scoped, tag = 'scoped memory for dqn_forward.1']
    %12 = vsyncpa [#allocation3], 0
    // Predicated region
    $region2: #{dqn_forward.1} parent=1 // pred_check
      _
    $region3: #{dqn_forward.1} parent=1 // pred_check_branch
      %14 = sbr.rel (0) target = $region5
    $region4: #{dqn_forward.1} parent=1 // pred_region
      _
    $region5: #{dqn_forward.1} parent=1 // pred_fallthru
      _
    // Predicated region
    $region6: #{dqn_forward.1} parent=1 // pred_check
      _
    $region7: #{dqn_forward.1} parent=1 // pred_check_branch
      %16 = sbr.rel (0) target = $region9
    $region8: #{dqn_forward.1} parent=1 // pred_region
      %s18 = ssub.s32 6144, 6144
      %19 = vsyncadd [#allocation3], %s18
      %s20 = sshll.u32 [#allocation2], 4
      %s21 = int_to_ptr.vmem [resolvable:$true] %s20
      %26 = dma.hbm_to_vmem [thread:$0]  %s1, 6144, %s21, [#allocation3], 64, 64, 4
    $region9: #{dqn_forward.1} parent=1 // pred_fallthru
      _
    // Predicated region
    $region10: #{dqn_forward.1} parent=1 // pred_check
      _
    $region11: #{dqn_forward.1} parent=1 // pred_check_branch
      %28 = sbr.rel (0) target = $region13
    $region12: #{dqn_forward.1} parent=1 // pred_region
      _
    $region13: #{dqn_forward.1} parent=1 // pred_fallthru
      _
    // Predicated region
    $region14: #{dqn_forward.1} parent=1 // pred_check
      _
    $region15: #{dqn_forward.1} parent=1 // pred_check_branch
      %30 = sbr.rel (0) target = $region17
    $region16: #{dqn_forward.1} parent=1 // pred_region
      _
    $region17: #{dqn_forward.1} parent=1 // pred_fallthru
      _
    // Predicated region
    $region18: #{dqn_forward.1} parent=1 // pred_check
      _
    $region19: #{dqn_forward.1} parent=1 // pred_check_branch
      %32 = sbr.rel (0) target = $region21
    $region20: #{dqn_forward.1} parent=1 // pred_region
      _
    $region21: #{dqn_forward.1} parent=1 // pred_fallthru
      _
    // Predicated region
    $region22: #{dqn_forward.1} parent=1 // pred_check
      _
    $region23: #{dqn_forward.1} parent=1 // pred_check_branch
      %34 = sbr.rel (0) target = $region25
    $region24: #{dqn_forward.1} parent=1 // pred_region
      _
    $region25: #{dqn_forward.1} parent=1 // pred_fallthru
      _
    // Predicated region
    $region26: #{dqn_forward.1} parent=1 // pred_check
      _
    $region27: #{dqn_forward.1} parent=1 // pred_check_branch
      %36 = sbr.rel (0) target = $region29
    $region28: #{dqn_forward.1} parent=1 // pred_region
      _
    $region29: #{dqn_forward.1} parent=1 // pred_fallthru
      _
    // Predicated region
    $region30: #{dqn_forward.1} parent=1 // pred_check
      _
    $region31: #{dqn_forward.1} parent=1 // pred_check_branch
      %38 = sbr.rel (0) target = $region33
    $region32: #{dqn_forward.1} parent=1 // pred_region
      %39 = dma.done [#allocation3], 6144
    $region33: #{dqn_forward.1} parent=1 // pred_fallthru
      _
    %v41 = vld [vmem:[%s0] sm:$0xff]
    %v42 = vld [vmem:[%s0 + $0x8] sm:$0xff]
    %v43 = vld [vmem:[%s0 + $0x10] sm:$0xff]
    %v44 = vld [vmem:[#allocation2] sm:$0xf]
    %v45 = vld [vmem:[#allocation2 + $0x4] sm:$0xf]
    %v46 = vld [vmem:[#allocation2 + $0x8] sm:$0xf]
    %v47 = vld [vmem:[#allocation2 + $0xc] sm:$0xf]
    %v48 = vld [vmem:[#allocation2 + $0x10] sm:$0xf]
    %v49 = vld [vmem:[#allocation2 + $0x14] sm:$0xf]
    %v50 = vld [vmem:[#allocation2 + $0x18] sm:$0xf]
    %v51 = vld [vmem:[#allocation2 + $0x1c] sm:$0xf]
    %v52 = vld [vmem:[#allocation2 + $0x20] sm:$0xf]
    %v53 = vld [vmem:[#allocation2 + $0x24] sm:$0xf]
    %v54 = vld [vmem:[#allocation2 + $0x28] sm:$0xf]
    %v55 = vld [vmem:[#allocation2 + $0x2c] sm:$0xf]
    %v56 = vld [vmem:[#allocation2 + $0x30] sm:$0xf]
    %v57 = vld [vmem:[#allocation2 + $0x34] sm:$0xf]
    %v58 = vld [vmem:[#allocation2 + $0x38] sm:$0xf]
    %v59 = vld [vmem:[#allocation2 + $0x3c] sm:$0xf]
    %v60 = vld [vmem:[#allocation2 + $0x40] sm:$0xf]
    %v61 = vld [vmem:[#allocation2 + $0x44] sm:$0xf]
    %v62 = vld [vmem:[#allocation2 + $0x48] sm:$0xf]
    %v63 = vld [vmem:[#allocation2 + $0x4c] sm:$0xf]
    %v64 = vld [vmem:[#allocation2 + $0x50] sm:$0xf]
    %v65 = vld [vmem:[#allocation2 + $0x54] sm:$0xf]
    %v66 = vld [vmem:[#allocation2 + $0x58] sm:$0xf]
    %v67 = vld [vmem:[#allocation2 + $0x5c] sm:$0xf]
    %v68 = vld [vmem:[#allocation2 + $0x60] sm:$0xf]
    %v69 = vld [vmem:[#allocation2 + $0x64] sm:$0xf]
    %v70 = vld [vmem:[#allocation2 + $0x68] sm:$0xf]
    %v71 = vld [vmem:[#allocation2 + $0x6c] sm:$0xf]
    %v72 = vld [vmem:[#allocation2 + $0x70] sm:$0xf]
    %v73 = vld [vmem:[#allocation2 + $0x74] sm:$0xf]
    %v74 = vld [vmem:[#allocation2 + $0x78] sm:$0xf]
    %v75 = vld [vmem:[#allocation2 + $0x7c] sm:$0xf]
    %v76 = vld [vmem:[#allocation2 + $0x80] sm:$0xf]
    %v77 = vld [vmem:[#allocation2 + $0x84] sm:$0xf]
    %v78 = vld [vmem:[#allocation2 + $0x88] sm:$0xf]
    %v79 = vld [vmem:[#allocation2 + $0x8c] sm:$0xf]
    %v80 = vld [vmem:[#allocation2 + $0x90] sm:$0xf]
    %v81 = vld [vmem:[#allocation2 + $0x94] sm:$0xf]
    %v82 = vld [vmem:[#allocation2 + $0x98] sm:$0xf]
    %v83 = vld [vmem:[#allocation2 + $0x9c] sm:$0xf]
    %v84 = vld [vmem:[#allocation2 + $0xa0] sm:$0xf]
    %v85 = vld [vmem:[#allocation2 + $0xa4] sm:$0xf]
    %v86 = vld [vmem:[#allocation2 + $0xa8] sm:$0xf]
    %v87 = vld [vmem:[#allocation2 + $0xac] sm:$0xf]
    %v88 = vld [vmem:[#allocation2 + $0xb0] sm:$0xf]
    %v89 = vld [vmem:[#allocation2 + $0xb4] sm:$0xf]
    %v90 = vld [vmem:[#allocation2 + $0xb8] sm:$0xf]
    %v91 = vld [vmem:[#allocation2 + $0xbc] sm:$0xf]
    %v92 = vld [vmem:[#allocation2 + $0xc0] sm:$0xf]
    %v93 = vld [vmem:[#allocation2 + $0xc4] sm:$0xf]
    %v94 = vld [vmem:[#allocation2 + $0xc8] sm:$0xf]
    %v95 = vld [vmem:[#allocation2 + $0xcc] sm:$0xf]
    %v96 = vld [vmem:[#allocation2 + $0xd0] sm:$0xf]
    %v97 = vld [vmem:[#allocation2 + $0xd4] sm:$0xf]
    %v98 = vld [vmem:[#allocation2 + $0xd8] sm:$0xf]
    %v99 = vld [vmem:[#allocation2 + $0xdc] sm:$0xf]
    %v100 = vld [vmem:[#allocation2 + $0xe0] sm:$0xf]
    %v101 = vld [vmem:[#allocation2 + $0xe4] sm:$0xf]
    %v102 = vld [vmem:[#allocation2 + $0xe8] sm:$0xf]
    %v103 = vld [vmem:[#allocation2 + $0xec] sm:$0xf]
    %v104 = vld [vmem:[#allocation2 + $0xf0] sm:$0xf]
    %v105 = vld [vmem:[#allocation2 + $0xf4] sm:$0xf]
    %v106 = vld [vmem:[#allocation2 + $0xf8] sm:$0xf]
    %v107 = vld [vmem:[#allocation2 + $0xfc] sm:$0xf]
    %v108 = vld [vmem:[#allocation2 + $0x100] sm:$0xf]
    %v109 = vld [vmem:[#allocation2 + $0x104] sm:$0xf]
    %v110 = vld [vmem:[#allocation2 + $0x108] sm:$0xf]
    %v111 = vld [vmem:[#allocation2 + $0x10c] sm:$0xf]
    %v112 = vld [vmem:[#allocation2 + $0x110] sm:$0xf]
    %v113 = vld [vmem:[#allocation2 + $0x114] sm:$0xf]
    %v114 = vld [vmem:[#allocation2 + $0x118] sm:$0xf]
    %v115 = vld [vmem:[#allocation2 + $0x11c] sm:$0xf]
    %v116 = vld [vmem:[#allocation2 + $0x120] sm:$0xf]
    %v117 = vld [vmem:[#allocation2 + $0x124] sm:$0xf]
    %v118 = vld [vmem:[#allocation2 + $0x128] sm:$0xf]
    %v119 = vld [vmem:[#allocation2 + $0x12c] sm:$0xf]
    %v120 = vld [vmem:[#allocation2 + $0x130] sm:$0xf]
    %v121 = vld [vmem:[#allocation2 + $0x134] sm:$0xf]
    %v122 = vld [vmem:[#allocation2 + $0x138] sm:$0xf]
    %v123 = vld [vmem:[#allocation2 + $0x13c] sm:$0xf]
    %v124 = vld [vmem:[#allocation2 + $0x140] sm:$0xf]
    %v125 = vld [vmem:[#allocation2 + $0x144] sm:$0xf]
    %v126 = vld [vmem:[#allocation2 + $0x148] sm:$0xf]
    %v127 = vld [vmem:[#allocation2 + $0x14c] sm:$0xf]
    %v128 = vld [vmem:[#allocation2 + $0x150] sm:$0xf]
    %v129 = vld [vmem:[#allocation2 + $0x154] sm:$0xf]
    %v130 = vld [vmem:[#allocation2 + $0x158] sm:$0xf]
    %v131 = vld [vmem:[#allocation2 + $0x15c] sm:$0xf]
    %v132 = vld [vmem:[#allocation2 + $0x160] sm:$0xf]
    %v133 = vld [vmem:[#allocation2 + $0x164] sm:$0xf]
    %v134 = vld [vmem:[#allocation2 + $0x168] sm:$0xf]
    %v135 = vld [vmem:[#allocation2 + $0x16c] sm:$0xf]
    %v136 = vld [vmem:[#allocation2 + $0x170] sm:$0xf]
    %v137 = vld [vmem:[#allocation2 + $0x174] sm:$0xf]
    %v138 = vld [vmem:[#allocation2 + $0x178] sm:$0xf]
    %v139 = vld [vmem:[#allocation2 + $0x17c] sm:$0xf]
    %v140 = vld [vmem:[%s2] sm:$0x1]
    %v142 = vlaneseq
    %v143 = vshrl.u32 %v142, 7
    %v144 = vsub.s32 0, %v143
    %v145 = vrot.slane %v140, %v144
    %v150 = vunpack.c.l.b16 %v41
    %v151 = vunpack.c.h.b16 %v41
    %v152 = vunpack.c.l.b16 %v42
    %v153 = vunpack.c.h.b16 %v42
    %v154 = vunpack.c.l.b16 %v43
    %v155 = vunpack.c.h.b16 %v43
    %v156 = vpack.c.b16 %v150, %v150
    %v157 = vpack.c.b16 %v151, %v151
    %v158 = vpack.c.b16 %v152, %v152
    %v159 = vpack.c.b16 %v153, %v153
    %v160 = vpack.c.b16 %v154, %v154
    %v161 = vpack.c.b16 %v155, %v155
    %v264 = vunpack.c.l.b16 %v44
    %v265 = vunpack.c.l.b16 %v45
    %v266 = vunpack.c.l.b16 %v46
    %v267 = vunpack.c.l.b16 %v47
    %v268 = vunpack.c.l.b16 %v48
    %v269 = vunpack.c.l.b16 %v49
    %v270 = vunpack.c.l.b16 %v50
    %v271 = vunpack.c.l.b16 %v51
    %v272 = vunpack.c.l.b16 %v52
    %v273 = vunpack.c.l.b16 %v53
    %v274 = vunpack.c.l.b16 %v54
    %v275 = vunpack.c.l.b16 %v55
    %v276 = vunpack.c.l.b16 %v56
    %v277 = vunpack.c.l.b16 %v57
    %v278 = vunpack.c.l.b16 %v58
    %v279 = vunpack.c.l.b16 %v59
    %v280 = vunpack.c.l.b16 %v60
    %v281 = vunpack.c.l.b16 %v61
    %v282 = vunpack.c.l.b16 %v62
    %v283 = vunpack.c.l.b16 %v63
    %v284 = vunpack.c.l.b16 %v64
    %v285 = vunpack.c.l.b16 %v65
    %v286 = vunpack.c.l.b16 %v66
    %v287 = vunpack.c.l.b16 %v67
    %v288 = vunpack.c.l.b16 %v68
    %v289 = vunpack.c.l.b16 %v69
    %v290 = vunpack.c.l.b16 %v70
    %v291 = vunpack.c.l.b16 %v71
    %v292 = vunpack.c.l.b16 %v72
    %v293 = vunpack.c.l.b16 %v73
    %v294 = vunpack.c.l.b16 %v74
    %v295 = vunpack.c.l.b16 %v75
    %v296 = vunpack.c.l.b16 %v76
    %v297 = vunpack.c.l.b16 %v77
    %v298 = vunpack.c.l.b16 %v78
    %v299 = vunpack.c.l.b16 %v79
    %v300 = vunpack.c.l.b16 %v80
    %v301 = vunpack.c.l.b16 %v81
    %v302 = vunpack.c.l.b16 %v82
    %v303 = vunpack.c.l.b16 %v83
    %v304 = vunpack.c.l.b16 %v84
    %v305 = vunpack.c.l.b16 %v85
    %v306 = vunpack.c.l.b16 %v86
    %v307 = vunpack.c.l.b16 %v87
    %v308 = vunpack.c.l.b16 %v88
    %v309 = vunpack.c.l.b16 %v89
    %v310 = vunpack.c.l.b16 %v90
    %v311 = vunpack.c.l.b16 %v91
    %v312 = vunpack.c.l.b16 %v92
    %v313 = vunpack.c.l.b16 %v93
    %v314 = vunpack.c.l.b16 %v94
    %v315 = vunpack.c.l.b16 %v95
    %v316 = vunpack.c.l.b16 %v96
    %v317 = vunpack.c.l.b16 %v97
    %v318 = vunpack.c.l.b16 %v98
    %v319 = vunpack.c.l.b16 %v99
    %v320 = vunpack.c.l.b16 %v100
    %v321 = vunpack.c.l.b16 %v101
    %v322 = vunpack.c.l.b16 %v102
    %v323 = vunpack.c.l.b16 %v103
    %v324 = vunpack.c.l.b16 %v104
    %v325 = vunpack.c.l.b16 %v105
    %v326 = vunpack.c.l.b16 %v106
    %v327 = vunpack.c.l.b16 %v107
    %v328 = vunpack.c.l.b16 %v108
    %v329 = vunpack.c.l.b16 %v109
    %v330 = vunpack.c.l.b16 %v110
    %v331 = vunpack.c.l.b16 %v111
    %v332 = vunpack.c.l.b16 %v112
    %v333 = vunpack.c.l.b16 %v113
    %v334 = vunpack.c.l.b16 %v114
    %v335 = vunpack.c.l.b16 %v115
    %v336 = vunpack.c.l.b16 %v116
    %v337 = vunpack.c.l.b16 %v117
    %v338 = vunpack.c.l.b16 %v118
    %v339 = vunpack.c.l.b16 %v119
    %v340 = vunpack.c.l.b16 %v120
    %v341 = vunpack.c.l.b16 %v121
    %v342 = vunpack.c.l.b16 %v122
    %v343 = vunpack.c.l.b16 %v123
    %v344 = vunpack.c.l.b16 %v124
    %v345 = vunpack.c.l.b16 %v125
    %v346 = vunpack.c.l.b16 %v126
    %v347 = vunpack.c.l.b16 %v127
    %v348 = vunpack.c.l.b16 %v128
    %v349 = vunpack.c.l.b16 %v129
    %v350 = vunpack.c.l.b16 %v130
    %v351 = vunpack.c.l.b16 %v131
    %v352 = vunpack.c.l.b16 %v132
    %v353 = vunpack.c.l.b16 %v133
    %v354 = vunpack.c.l.b16 %v134
    %v355 = vunpack.c.l.b16 %v135
    %v356 = vunpack.c.l.b16 %v136
    %v357 = vunpack.c.l.b16 %v137
    %v358 = vunpack.c.l.b16 %v138
    %v359 = vunpack.c.l.b16 %v139
    %v360 = vpack.c.b16 %v265, %v264
    %v361 = vpack.c.b16 %v267, %v266
    %v362 = vpack.c.b16 %v269, %v268
    %v363 = vpack.c.b16 %v271, %v270
    %v364 = vpack.c.b16 %v273, %v272
    %v365 = vpack.c.b16 %v275, %v274
    %v366 = vpack.c.b16 %v277, %v276
    %v367 = vpack.c.b16 %v279, %v278
    %v368 = vpack.c.b16 %v281, %v280
    %v369 = vpack.c.b16 %v283, %v282
    %v370 = vpack.c.b16 %v285, %v284
    %v371 = vpack.c.b16 %v287, %v286
    %v372 = vpack.c.b16 %v289, %v288
    %v373 = vpack.c.b16 %v291, %v290
    %v374 = vpack.c.b16 %v293, %v292
    %v375 = vpack.c.b16 %v295, %v294
    %v376 = vpack.c.b16 %v297, %v296
    %v377 = vpack.c.b16 %v299, %v298
    %v378 = vpack.c.b16 %v301, %v300
    %v379 = vpack.c.b16 %v303, %v302
    %v380 = vpack.c.b16 %v305, %v304
    %v381 = vpack.c.b16 %v307, %v306
    %v382 = vpack.c.b16 %v309, %v308
    %v383 = vpack.c.b16 %v311, %v310
    %v384 = vpack.c.b16 %v313, %v312
    %v385 = vpack.c.b16 %v315, %v314
    %v386 = vpack.c.b16 %v317, %v316
    %v387 = vpack.c.b16 %v319, %v318
    %v388 = vpack.c.b16 %v321, %v320
    %v389 = vpack.c.b16 %v323, %v322
    %v390 = vpack.c.b16 %v325, %v324
    %v391 = vpack.c.b16 %v327, %v326
    %v392 = vpack.c.b16 %v329, %v328
    %v393 = vpack.c.b16 %v331, %v330
    %v394 = vpack.c.b16 %v333, %v332
    %v395 = vpack.c.b16 %v335, %v334
    %v396 = vpack.c.b16 %v337, %v336
    %v397 = vpack.c.b16 %v339, %v338
    %v398 = vpack.c.b16 %v341, %v340
    %v399 = vpack.c.b16 %v343, %v342
    %v400 = vpack.c.b16 %v345, %v344
    %v401 = vpack.c.b16 %v347, %v346
    %v402 = vpack.c.b16 %v349, %v348
    %v403 = vpack.c.b16 %v351, %v350
    %v404 = vpack.c.b16 %v353, %v352
    %v405 = vpack.c.b16 %v355, %v354
    %v406 = vpack.c.b16 %v357, %v356
    %v407 = vpack.c.b16 %v359, %v358
    %456 = vmatprep.subr.bf16.mxu0 0
    %457 = vmatpush1.bf16.msra.mxu0 %v360
    %458 = vmatprep.subr.bf16.mxu0 0
    %459 = vmatpush1.bf16.msra.mxu0 %v361
    %460 = vmatprep.subr.bf16.mxu0 0
    %461 = vmatpush1.bf16.msra.mxu0 %v362
    %462 = vmatprep.subr.bf16.mxu0 0
    %463 = vmatpush1.bf16.msra.mxu0 %v363
    %464 = vmatprep.subr.bf16.mxu0 0
    %465 = vmatpush1.bf16.msra.mxu0 %v364
    %466 = vmatprep.subr.bf16.mxu0 0
    %467 = vmatpush1.bf16.msra.mxu0 %v365
    %468 = vmatprep.subr.bf16.mxu0 0
    %469 = vmatpush1.bf16.msra.mxu0 %v366
    %470 = vmatprep.subr.bf16.mxu0 0
    %471 = vmatpush1.bf16.msra.mxu0 %v367
    %472 = vmatprep.subr.bf16.mxu0 0
    %473 = vmatpush1.bf16.msra.mxu0 %v368
    %474 = vmatprep.subr.bf16.mxu0 0
    %475 = vmatpush1.bf16.msra.mxu0 %v369
    %476 = vmatprep.subr.bf16.mxu0 0
    %477 = vmatpush1.bf16.msra.mxu0 %v370
    %478 = vmatprep.subr.bf16.mxu0 0
    %479 = vmatpush1.bf16.msra.mxu0 %v371
    %480 = vmatprep.subr.bf16.mxu0 0
    %481 = vmatpush1.bf16.msra.mxu0 %v372
    %482 = vmatprep.subr.bf16.mxu0 0
    %483 = vmatpush1.bf16.msra.mxu0 %v373
    %484 = vmatprep.subr.bf16.mxu0 0
    %485 = vmatpush1.bf16.msra.mxu0 %v374
    %486 = vmatprep.subr.bf16.mxu0 0
    %487 = vmatpush1.bf16.msra.mxu0 %v375
    %488 = vmatprep.mubr.bf16.mxu0 %v157
    %489 = vmatmul.mubr.bf16.gmra.mrb[0].mxu0 %v156
    %v490 = vpop.f32.mrb[0].mxu0
    %v491 = vadd.f32 %v145, %v490
    %v492 = vpop.f32.mrb[0].mxu0
    %v493 = vpop.f32.mrb[0].mxu0
    %v494 = vpop.f32.mrb[0].mxu0
    %495 = vdwg.mxu0
    %496 = vmatprep.subr.bf16.mxu0 0
    %497 = vmatpush1.bf16.msra.mxu0 %v376
    %498 = vmatprep.subr.bf16.mxu0 0
    %499 = vmatpush1.bf16.msra.mxu0 %v377
    %500 = vmatprep.subr.bf16.mxu0 0
    %501 = vmatpush1.bf16.msra.mxu0 %v378
    %502 = vmatprep.subr.bf16.mxu0 0
    %503 = vmatpush1.bf16.msra.mxu0 %v379
    %504 = vmatprep.subr.bf16.mxu0 0
    %505 = vmatpush1.bf16.msra.mxu0 %v380
    %506 = vmatprep.subr.bf16.mxu0 0
    %507 = vmatpush1.bf16.msra.mxu0 %v381
    %508 = vmatprep.subr.bf16.mxu0 0
    %509 = vmatpush1.bf16.msra.mxu0 %v382
    %510 = vmatprep.subr.bf16.mxu0 0
    %511 = vmatpush1.bf16.msra.mxu0 %v383
    %512 = vmatprep.subr.bf16.mxu0 0
    %513 = vmatpush1.bf16.msra.mxu0 %v384
    %514 = vmatprep.subr.bf16.mxu0 0
    %515 = vmatpush1.bf16.msra.mxu0 %v385
    %516 = vmatprep.subr.bf16.mxu0 0
    %517 = vmatpush1.bf16.msra.mxu0 %v386
    %518 = vmatprep.subr.bf16.mxu0 0
    %519 = vmatpush1.bf16.msra.mxu0 %v387
    %520 = vmatprep.subr.bf16.mxu0 0
    %521 = vmatpush1.bf16.msra.mxu0 %v388
    %522 = vmatprep.subr.bf16.mxu0 0
    %523 = vmatpush1.bf16.msra.mxu0 %v389
    %524 = vmatprep.subr.bf16.mxu0 0
    %525 = vmatpush1.bf16.msra.mxu0 %v390
    %526 = vmatprep.subr.bf16.mxu0 0
    %527 = vmatpush1.bf16.msra.mxu0 %v391
    %528 = vmatprep.mubr.bf16.mxu0 %v159
    %529 = vmatmul.mubr.bf16.gmra.mrb[0].mxu0 %v158
    %v530 = vpop.f32.mrb[0].mxu0
    %v531 = vadd.f32 %v491, %v530
    %v532 = vpop.f32.mrb[0].mxu0
    %v533 = vpop.f32.mrb[0].mxu0
    %v534 = vpop.f32.mrb[0].mxu0
    %535 = vdwg.mxu0
    %536 = vmatprep.subr.bf16.mxu0 0
    %537 = vmatpush1.bf16.msra.mxu0 %v392
    %538 = vmatprep.subr.bf16.mxu0 0
    %539 = vmatpush1.bf16.msra.mxu0 %v393
    %540 = vmatprep.subr.bf16.mxu0 0
    %541 = vmatpush1.bf16.msra.mxu0 %v394
    %542 = vmatprep.subr.bf16.mxu0 0
    %543 = vmatpush1.bf16.msra.mxu0 %v395
    %544 = vmatprep.subr.bf16.mxu0 0
    %545 = vmatpush1.bf16.msra.mxu0 %v396
    %546 = vmatprep.subr.bf16.mxu0 0
    %547 = vmatpush1.bf16.msra.mxu0 %v397
    %548 = vmatprep.subr.bf16.mxu0 0
    %549 = vmatpush1.bf16.msra.mxu0 %v398
    %550 = vmatprep.subr.bf16.mxu0 0
    %551 = vmatpush1.bf16.msra.mxu0 %v399
    %552 = vmatprep.subr.bf16.mxu0 0
    %553 = vmatpush1.bf16.msra.mxu0 %v400
    %554 = vmatprep.subr.bf16.mxu0 0
    %555 = vmatpush1.bf16.msra.mxu0 %v401
    %556 = vmatprep.subr.bf16.mxu0 0
    %557 = vmatpush1.bf16.msra.mxu0 %v402
    %558 = vmatprep.subr.bf16.mxu0 0
    %559 = vmatpush1.bf16.msra.mxu0 %v403
    %560 = vmatprep.subr.bf16.mxu0 0
    %561 = vmatpush1.bf16.msra.mxu0 %v404
    %562 = vmatprep.subr.bf16.mxu0 0
    %563 = vmatpush1.bf16.msra.mxu0 %v405
    %564 = vmatprep.subr.bf16.mxu0 0
    %565 = vmatpush1.bf16.msra.mxu0 %v406
    %566 = vmatprep.subr.bf16.mxu0 0
    %567 = vmatpush1.bf16.msra.mxu0 %v407
    %568 = vmatprep.mubr.bf16.mxu0 %v161
    %569 = vmatmul.mubr.bf16.gmra.mrb[0].mxu0 %v160
    %v570 = vpop.f32.mrb[0].mxu0
    %v571 = vadd.f32 %v531, %v570
    %v572 = vpop.f32.mrb[0].mxu0
    %v573 = vpop.f32.mrb[0].mxu0
    %v574 = vpop.f32.mrb[0].mxu0
    %575 = vdwg.mxu0
    %v576 = vmax.f32 %v571, 0.0
    %v577 = vpack.c.bf16 %v576, %v576
    %v578 = vld [vmem:[%s3] sm:$0xf]
    %v579 = vld [vmem:[%s3 + $0x4] sm:$0xf]
    %v580 = vld [vmem:[%s3 + $0x8] sm:$0xf]
    %v581 = vld [vmem:[%s3 + $0xc] sm:$0xf]
    %v582 = vld [vmem:[%s3 + $0x10] sm:$0xf]
    %v583 = vld [vmem:[%s3 + $0x14] sm:$0xf]
    %v584 = vld [vmem:[%s3 + $0x18] sm:$0xf]
    %v585 = vld [vmem:[%s3 + $0x1c] sm:$0xf]
    %v586 = vld [vmem:[%s3 + $0x20] sm:$0xf]
    %v587 = vld [vmem:[%s3 + $0x24] sm:$0xf]
    %v588 = vld [vmem:[%s3 + $0x28] sm:$0xf]
    %v589 = vld [vmem:[%s3 + $0x2c] sm:$0xf]
    %v590 = vld [vmem:[%s3 + $0x30] sm:$0xf]
    %v591 = vld [vmem:[%s3 + $0x34] sm:$0xf]
    %v592 = vld [vmem:[%s3 + $0x38] sm:$0xf]
    %v593 = vld [vmem:[%s3 + $0x3c] sm:$0xf]
    %v594 = vld [vmem:[%s4] sm:$0x1]
    %v596 = vlaneseq
    %v597 = vshrl.u32 %v596, 7
    %v598 = vsub.s32 0, %v597
    %v599 = vrot.slane %v594, %v598
    %v617 = vunpack.c.l.b16 %v578
    %v618 = vunpack.c.l.b16 %v579
    %v619 = vunpack.c.l.b16 %v580
    %v620 = vunpack.c.l.b16 %v581
    %v621 = vunpack.c.l.b16 %v582
    %v622 = vunpack.c.l.b16 %v583
    %v623 = vunpack.c.l.b16 %v584
    %v624 = vunpack.c.l.b16 %v585
    %v625 = vunpack.c.l.b16 %v586
    %v626 = vunpack.c.l.b16 %v587
    %v627 = vunpack.c.l.b16 %v588
    %v628 = vunpack.c.l.b16 %v589
    %v629 = vunpack.c.l.b16 %v590
    %v630 = vunpack.c.l.b16 %v591
    %v631 = vunpack.c.l.b16 %v592
    %v632 = vunpack.c.l.b16 %v593
    %v633 = vpack.c.b16 %v618, %v617
    %v634 = vpack.c.b16 %v620, %v619
    %v635 = vpack.c.b16 %v622, %v621
    %v636 = vpack.c.b16 %v624, %v623
    %v637 = vpack.c.b16 %v626, %v625
    %v638 = vpack.c.b16 %v628, %v627
    %v639 = vpack.c.b16 %v630, %v629
    %v640 = vpack.c.b16 %v632, %v631
    %649 = vmatprep.subr.bf16.mxu0 0
    %650 = vmatpush1.bf16.msra.mxu0 %v633
    %651 = vmatprep.subr.bf16.mxu0 0
    %652 = vmatpush1.bf16.msra.mxu0 %v634
    %653 = vmatprep.subr.bf16.mxu0 0
    %654 = vmatpush1.bf16.msra.mxu0 %v635
    %655 = vmatprep.subr.bf16.mxu0 0
    %656 = vmatpush1.bf16.msra.mxu0 %v636
    %657 = vmatprep.subr.bf16.mxu0 0
    %658 = vmatpush1.bf16.msra.mxu0 %v637
    %659 = vmatprep.subr.bf16.mxu0 0
    %660 = vmatpush1.bf16.msra.mxu0 %v638
    %661 = vmatprep.subr.bf16.mxu0 0
    %662 = vmatpush1.bf16.msra.mxu0 %v639
    %663 = vmatprep.subr.bf16.mxu0 0
    %664 = vmatpush1.bf16.msra.mxu0 %v640
    %665 = vmatprep.subr.bf16.mxu0 0
    %666 = vmatpush1.bf16.msra.mxu0 0
    %667 = vmatprep.subr.bf16.mxu0 0
    %668 = vmatpush1.bf16.msra.mxu0 0
    %669 = vmatprep.subr.bf16.mxu0 0
    %670 = vmatpush1.bf16.msra.mxu0 0
    %671 = vmatprep.subr.bf16.mxu0 0
    %672 = vmatpush1.bf16.msra.mxu0 0
    %673 = vmatprep.subr.bf16.mxu0 0
    %674 = vmatpush1.bf16.msra.mxu0 0
    %675 = vmatprep.subr.bf16.mxu0 0
    %676 = vmatpush1.bf16.msra.mxu0 0
    %677 = vmatprep.subr.bf16.mxu0 0
    %678 = vmatpush1.bf16.msra.mxu0 0
    %679 = vmatprep.subr.bf16.mxu0 0
    %680 = vmatpush1.bf16.msra.mxu0 0
    %681 = vmatprep.mubr.bf16.mxu0 0
    %682 = vmatmul.mubr.bf16.gmra.mrb[0].mxu0 %v577
    %v683 = vpop.f32.mrb[0].mxu0
    %v684 = vadd.f32 %v599, %v683
    %v685 = vpop.f32.mrb[0].mxu0
    %v686 = vpop.f32.mrb[0].mxu0
    %v687 = vpop.f32.mrb[0].mxu0
    %688 = vdwg.mxu0
    %v689 = vmax.f32 %v684, 0.0
    %v690 = vpack.c.bf16 %v689, %v689
    %v691 = vld [vmem:[%s5] sm:$0xf]
    %v692 = vld [vmem:[%s5 + $0x4] sm:$0xf]
    %v693 = vld [vmem:[%s5 + $0x8] sm:$0xf]
    %v694 = vld [vmem:[%s5 + $0xc] sm:$0xf]
    %v695 = vld [vmem:[%s5 + $0x10] sm:$0xf]
    %v696 = vld [vmem:[%s5 + $0x14] sm:$0xf]
    %v697 = vld [vmem:[%s5 + $0x18] sm:$0xf]
    %v698 = vld [vmem:[%s5 + $0x1c] sm:$0xf]
    %v699 = vld [vmem:[%s5 + $0x20] sm:$0xf]
    %v700 = vld [vmem:[%s5 + $0x24] sm:$0xf]
    %v701 = vld [vmem:[%s5 + $0x28] sm:$0xf]
    %v702 = vld [vmem:[%s5 + $0x2c] sm:$0xf]
    %v703 = vld [vmem:[%s5 + $0x30] sm:$0xf]
    %v704 = vld [vmem:[%s5 + $0x34] sm:$0xf]
    %v705 = vld [vmem:[%s5 + $0x38] sm:$0xf]
    %v706 = vld [vmem:[%s5 + $0x3c] sm:$0xf]
    %v707 = vld [vmem:[%s6] sm:$0x1]
    %v709 = vlaneseq
    %v710 = vshrl.u32 %v709, 7
    %v711 = vsub.s32 0, %v710
    %v712 = vrot.slane %v707, %v711
    %v730 = vunpack.c.l.b16 %v691
    %v731 = vunpack.c.l.b16 %v692
    %v732 = vunpack.c.l.b16 %v693
    %v733 = vunpack.c.l.b16 %v694
    %v734 = vunpack.c.l.b16 %v695
    %v735 = vunpack.c.l.b16 %v696
    %v736 = vunpack.c.l.b16 %v697
    %v737 = vunpack.c.l.b16 %v698
    %v738 = vunpack.c.l.b16 %v699
    %v739 = vunpack.c.l.b16 %v700
    %v740 = vunpack.c.l.b16 %v701
    %v741 = vunpack.c.l.b16 %v702
    %v742 = vunpack.c.l.b16 %v703
    %v743 = vunpack.c.l.b16 %v704
    %v744 = vunpack.c.l.b16 %v705
    %v745 = vunpack.c.l.b16 %v706
    %v746 = vpack.c.b16 %v731, %v730
    %v747 = vpack.c.b16 %v733, %v732
    %v748 = vpack.c.b16 %v735, %v734
    %v749 = vpack.c.b16 %v737, %v736
    %v750 = vpack.c.b16 %v739, %v738
    %v751 = vpack.c.b16 %v741, %v740
    %v752 = vpack.c.b16 %v743, %v742
    %v753 = vpack.c.b16 %v745, %v744
    %762 = vmatprep.subr.bf16.mxu0 0
    %763 = vmatpush1.bf16.msra.mxu0 %v746
    %764 = vmatprep.subr.bf16.mxu0 0
    %765 = vmatpush1.bf16.msra.mxu0 %v747
    %766 = vmatprep.subr.bf16.mxu0 0
    %767 = vmatpush1.bf16.msra.mxu0 %v748
    %768 = vmatprep.subr.bf16.mxu0 0
    %769 = vmatpush1.bf16.msra.mxu0 %v749
    %770 = vmatprep.subr.bf16.mxu0 0
    %771 = vmatpush1.bf16.msra.mxu0 %v750
    %772 = vmatprep.subr.bf16.mxu0 0
    %773 = vmatpush1.bf16.msra.mxu0 %v751
    %774 = vmatprep.subr.bf16.mxu0 0
    %775 = vmatpush1.bf16.msra.mxu0 %v752
    %776 = vmatprep.subr.bf16.mxu0 0
    %777 = vmatpush1.bf16.msra.mxu0 %v753
    %778 = vmatprep.subr.bf16.mxu0 0
    %779 = vmatpush1.bf16.msra.mxu0 0
    %780 = vmatprep.subr.bf16.mxu0 0
    %781 = vmatpush1.bf16.msra.mxu0 0
    %782 = vmatprep.subr.bf16.mxu0 0
    %783 = vmatpush1.bf16.msra.mxu0 0
    %784 = vmatprep.subr.bf16.mxu0 0
    %785 = vmatpush1.bf16.msra.mxu0 0
    %786 = vmatprep.subr.bf16.mxu0 0
    %787 = vmatpush1.bf16.msra.mxu0 0
    %788 = vmatprep.subr.bf16.mxu0 0
    %789 = vmatpush1.bf16.msra.mxu0 0
    %790 = vmatprep.subr.bf16.mxu0 0
    %791 = vmatpush1.bf16.msra.mxu0 0
    %792 = vmatprep.subr.bf16.mxu0 0
    %793 = vmatpush1.bf16.msra.mxu0 0
    %794 = vmatprep.mubr.bf16.mxu0 0
    %795 = vmatmul.mubr.bf16.gmra.mrb[0].mxu0 %v690
    %v796 = vpop.f32.mrb[0].mxu0
    %v797 = vadd.f32 %v712, %v796
    %v798 = vpop.f32.mrb[0].mxu0
    %v799 = vpop.f32.mrb[0].mxu0
    %v800 = vpop.f32.mrb[0].mxu0
    %801 = vdwg.mxu0
    %802 = vst [vmem:[%s7] sm:$0xff] %v797
    // Predicated region
    $region34: #{dqn_forward.1} parent=1 // pred_check
      _
    $region35: #{dqn_forward.1} parent=1 // pred_check_branch
      %804 = sbr.rel (0) target = $region37
    $region36: #{dqn_forward.1} parent=1 // pred_region
      _
    $region37: #{dqn_forward.1} parent=1 // pred_fallthru
      _
    // Predicated region
    $region38: #{dqn_forward.1} parent=1 // pred_check
      _
    $region39: #{dqn_forward.1} parent=1 // pred_check_branch
      %806 = sbr.rel (0) target = $region41
    $region40: #{dqn_forward.1} parent=1 // pred_region
      _
    $region41: #{dqn_forward.1} parent=1 // pred_fallthru
      _
    %807 = vsyncpa [#allocation3], 1

</llo_original>
